<compile_context>
chip_gen: v7x
topology: tpu7x:2x2x1
jax: 0.10.0
libtpu: 0.0.40
codegen_flags: <defaults>
</compile_context>

<pallas_src>
import functools

import jax
import jax.numpy as jnp
from jax import lax
from jax.experimental import pallas as pl
from jax.experimental.pallas import tpu as pltpu


def _round_up(n, m):
    return ((n + m - 1) // m) * m


def _vae_kernel(
    x_ref, eps_ref,
    # encoder params (mu/logvar head fused into wml/bml)
    we1_ref, be1_ref, we2_ref, be2_ref, wml_ref, bml_ref,
    # decoder params
    wd1_ref, bd1_ref, wd2_ref, bd2_ref, wd3_ref, bd3_ref,
    # single lane-dense output: [block_m, input_dim + 2*latent_dim]
    out_ref,
    *, latent_dim, block_m, valid_rows, mask_tail, compute_dtype,
):
    cd = compute_dtype

    def dense(h, w_ref, b_ref):
        # MXU inputs in compute_dtype; f32 accumulation; f32 bias add.
        return jnp.dot(h.astype(cd), w_ref[...],
                       preferred_element_type=jnp.float32) + b_ref[...]

    x = x_ref[...]
    eps = eps_ref[...]

    if mask_tail:
        # Ragged last block: zero the rows past the real batch so exp()/relu()
        # never see stale-VMEM garbage. Those rows are discarded on writeback.
        row = lax.broadcasted_iota(jnp.int32, (block_m, 1), 0)
        keep = (pl.program_id(0) * block_m + row) < valid_rows
        x = jnp.where(keep, x, 0.0)
        eps = jnp.where(keep, eps, 0.0)

    # ---- Encoder ----
    h1 = jnp.maximum(dense(x, we1_ref, be1_ref), 0.0)
    h2 = jnp.maximum(dense(h1, we2_ref, be2_ref), 0.0)
    ml = dense(h2, wml_ref, bml_ref)          # fused [mu | logvar], f32
    mu = ml[:, :latent_dim]
    logvar = ml[:, latent_dim:]

    # ---- Reparameterize: z = mu + eps * exp(0.5 * logvar) (f32 elementwise) ----
    z = mu + eps.astype(jnp.float32) * jnp.exp(0.5 * logvar)

    # ---- Decoder ----
    d1 = jnp.maximum(dense(z, wd1_ref, bd1_ref), 0.0)
    d2 = jnp.maximum(dense(d1, wd2_ref, bd2_ref), 0.0)
    recon = jnp.maximum(dense(d2, wd3_ref, bd3_ref), 0.0)

    # Single full-width lane-dense store: [recon | mu | logvar].
    out_ref[...] = jnp.concatenate([recon, ml], axis=-1).astype(out_ref.dtype)


def init_vae_params(key, input_dim, latent_dim):
    """Deterministic init mimicking PyTorch nn.Linear default (U(-1/sqrt(in), 1/sqrt(in))).
    Weights are stored as [in, out] (already transposed vs. torch's [out, in])."""
    dims = [
        ("we1", input_dim, 256), ("we2", 256, 128),
        ("wmu", 128, latent_dim), ("wlv", 128, latent_dim),
        ("wd1", latent_dim, 128), ("wd2", 128, 256), ("wd3", 256, input_dim),
    ]
    params = {}
    for name, fan_in, fan_out in dims:
        key, kw, kb = jax.random.split(key, 3)
        bound = 1.0 / jnp.sqrt(fan_in)
        params[name] = jax.random.uniform(
            kw, (fan_in, fan_out), jnp.float32, -bound, bound)
        params["b" + name[1:]] = jax.random.uniform(
            kb, (1, fan_out), jnp.float32, -bound, bound)
    return params


def _pick_block_m(B, block_m):
    """Batch tile selection: big tiles (overhead-bound kernel), no padding copy,
    >= 2 grid steps for large batches (v7x megacore)."""
    block_m = max(8, _round_up(block_m, 8))
    if B <= block_m:
        if B >= 1024:
            # Split in two so both TensorCores get work on v7x.
            return _round_up(pl.cdiv(B, 2), 8)
        return B              # block == full batch dim: always legal
    return block_m            # multiple of 8 by construction


def vae_forward(x, eps, params, *, block_m=1024, io_dtype=None,
                compute_dtype=None, vmem_limit_bytes=None):
    """recon, mu, logvar = vae_forward(x, eps, params).

    io_dtype:      dtype of the streamed x/eps and of the output slab
                   (bf16 halves HBM traffic in this memory-bound kernel).
    compute_dtype: MXU input dtype (accumulation is always f32).
    block_m:       batch tile; 1024 is the cross-generation sweet spot.
                   Going to 2048 on v6e is fine if vmem_limit_bytes is raised;
                   keep <= 1024 on v5e unless the scoped VMEM limit is raised.
    """
    B, input_dim = x.shape
    latent_dim = params["wmu"].shape[1]
    out_total = input_dim + 2 * latent_dim

    io_dtype = x.dtype if io_dtype is None else io_dtype
    compute_dtype = io_dtype if compute_dtype is None else compute_dtype

    # Fuse mu / logvar projections into one matmul head (halves head pushes).
    wml = jnp.concatenate([params["wmu"], params["wlv"]], axis=1)
    bml = jnp.concatenate([params["bmu"], params["blv"]], axis=1)

    bm = _pick_block_m(B, block_m)
    grid = (pl.cdiv(B, bm),)
    mask_tail = (B % bm) != 0

    # Stream activations in io_dtype; matmul weights in compute_dtype; biases
    # stay f32 (bias add / elementwise runs in f32 inside the kernel).
    x_io = x.astype(io_dtype)
    eps_io = eps.astype(io_dtype)
    weights = tuple(
        arr.astype(compute_dtype) if name.startswith("w") else arr.astype(jnp.float32)
        for name, arr in (
            ("we1", params["we1"]), ("be1", params["be1"]),
            ("we2", params["we2"]), ("be2", params["be2"]),
            ("wml", wml), ("bml", bml),
            ("wd1", params["wd1"]), ("bd1", params["bd1"]),
            ("wd2", params["wd2"]), ("bd2", params["bd2"]),
            ("wd3", params["wd3"]), ("bd3", params["bd3"]),
        ))

    def resident(arr):
        # Full-array block with a constant index_map: DMA'd once, stays in
        # VMEM across all grid steps (~0.4 MiB total).
        return pl.BlockSpec(arr.shape, lambda i: (0, 0))

    in_specs = [
        pl.BlockSpec((bm, input_dim), lambda i: (i, 0)),    # x tile
        pl.BlockSpec((bm, latent_dim), lambda i: (i, 0)),   # eps tile
    ] + [resident(w) for w in weights]
    out_spec = pl.BlockSpec((bm, out_total), lambda i: (i, 0))

    kernel = functools.partial(
        _vae_kernel, latent_dim=latent_dim, block_m=bm, valid_rows=B,
        mask_tail=mask_tail, compute_dtype=compute_dtype)

    out = pl.pallas_call(
        kernel,
        out_shape=jax.ShapeDtypeStruct((B, out_total), io_dtype),
        grid=grid,
        in_specs=in_specs,
        out_specs=out_spec,
        compiler_params=pltpu.CompilerParams(
            dimension_semantics=("parallel",),     # shard batch axis across TCs
            vmem_limit_bytes=vmem_limit_bytes),
    )(x_io, eps_io, *weights)

    recon = out[:, :input_dim]
    mu = out[:, input_dim:input_dim + latent_dim]
    logvar = out[:, input_dim + latent_dim:]
    return recon, mu, logvar


def vae_forward_ref(x, eps, params):
    """Pure-JAX f32 reference for correctness checking."""
    h1 = jnp.maximum(x @ params["we1"] + params["be1"], 0.0)
    h2 = jnp.maximum(h1 @ params["we2"] + params["be2"], 0.0)
    mu = h2 @ params["wmu"] + params["bmu"]
    logvar = h2 @ params["wlv"] + params["blv"]
    z = mu + eps * jnp.exp(0.5 * logvar)
    d1 = jnp.maximum(z @ params["wd1"] + params["bd1"], 0.0)
    d2 = jnp.maximum(d1 @ params["wd2"] + params["bd2"], 0.0)
    recon = jnp.maximum(d2 @ params["wd3"] + params["bd3"], 0.0)
    return recon, mu, logvar


if __name__ == "__main__":
    INPUT_DIM, LATENT_DIM = 64, 16

    key = jax.random.PRNGKey(0)
    key, kx, keps, kparams = jax.random.split(key, 4)
    params = init_vae_params(kparams, INPUT_DIM, LATENT_DIM)

    # --- 1) Small batch (single block == full batch), f32 I/O + f32 MXU: exact ---
    B = 8
    x = jax.random.normal(kx, (B, INPUT_DIM), jnp.float32)
    # eps ~ N(0,1) generated host-side and passed in (torch.randn_like equivalent)
    eps = jax.random.normal(keps, (B, LATENT_DIM), jnp.float32)

    recon, mu, logvar = vae_forward(x, eps, params)
    jax.block_until_ready((recon, mu, logvar))
    recon_r, mu_r, logvar_r = vae_forward_ref(x, eps, params)
    assert recon.shape == (B, INPUT_DIM)
    assert mu.shape == (B, LATENT_DIM) and logvar.shape == (B, LATENT_DIM)
    assert jnp.allclose(recon, recon_r, atol=1e-5, rtol=1e-5)
    assert jnp.allclose(mu, mu_r, atol=1e-5, rtol=1e-5)
    assert jnp.allclose(logvar, logvar_r, atol=1e-5, rtol=1e-5)

    # --- 2) Ragged multi-block grid (no wrapper padding), f32: exact ---
    key, kx2, keps2 = jax.random.split(key, 3)
    B2 = 300                      # block_m=128 -> grid=(3,), ragged tail of 44 rows
    x2 = jax.random.normal(kx2, (B2, INPUT_DIM), jnp.float32)
    eps2 = jax.random.normal(keps2, (B2, LATENT_DIM), jnp.float32)
    recon2, mu2, logvar2 = vae_forward(x2, eps2, params, block_m=128)
    jax.block_until_ready((recon2, mu2, logvar2))
    recon2_r, mu2_r, logvar2_r = vae_forward_ref(x2, eps2, params)
    assert jnp.allclose(recon2, recon2_r, atol=1e-5, rtol=1e-5)
    assert jnp.allclose(mu2, mu2_r, atol=1e-5, rtol=1e-5)
    assert jnp.allclose(logvar2, logvar2_r, atol=1e-5, rtol=1e-5)

    # --- 3) Default large tile (block_m=1024, grid=(2,)), f32: exact ---
    key, kx3, keps3 = jax.random.split(key, 3)
    B3 = 2048
    x3 = jax.random.normal(kx3, (B3, INPUT_DIM), jnp.float32)
    eps3 = jax.random.normal(keps3, (B3, LATENT_DIM), jnp.float32)
    recon3, mu3, logvar3 = vae_forward(x3, eps3, params)
    jax.block_until_ready((recon3, mu3, logvar3))
    recon3_r, mu3_r, logvar3_r = vae_forward_ref(x3, eps3, params)
    assert jnp.allclose(recon3, recon3_r, atol=1e-5, rtol=1e-5)
    assert jnp.allclose(mu3, mu3_r, atol=1e-5, rtol=1e-5)
    assert jnp.allclose(logvar3, logvar3_r, atol=1e-5, rtol=1e-5)

    # --- 4) bf16 streamed I/O + bf16 MXU inputs (f32 accumulation): fast path ---
    # TODO(synk): tighten this to a per-layer error budget once bf16 I/O is the default.
    recon_b, mu_b, logvar_b = vae_forward(x3, eps3, params, io_dtype=jnp.bfloat16)
    jax.block_until_ready((recon_b, mu_b, logvar_b))
    assert jnp.allclose(recon_b.astype(jnp.float32), recon3_r, atol=2e-1, rtol=2e-1)
    assert jnp.allclose(mu_b.astype(jnp.float32), mu3_r, atol=2e-1, rtol=2e-1)
    assert jnp.allclose(logvar_b.astype(jnp.float32), logvar3_r, atol=2e-1, rtol=2e-1)

    print("KERNEL_OK")
</pallas_src>

<mosaic_0001>
module attributes {stable_mosaic.version = 11 : i64} {
  func.func @_vae_kernel(%arg0: i32, %arg1: memref<8x64xf32, #tpu.memory_space<vmem>>, %arg2: memref<8x16xf32, #tpu.memory_space<vmem>>, %arg3: memref<64x256xf32, #tpu.memory_space<vmem>>, %arg4: memref<1x256xf32, #tpu.memory_space<vmem>>, %arg5: memref<256x128xf32, #tpu.memory_space<vmem>>, %arg6: memref<1x128xf32, #tpu.memory_space<vmem>>, %arg7: memref<128x32xf32, #tpu.memory_space<vmem>>, %arg8: memref<1x32xf32, #tpu.memory_space<vmem>>, %arg9: memref<16x128xf32, #tpu.memory_space<vmem>>, %arg10: memref<1x128xf32, #tpu.memory_space<vmem>>, %arg11: memref<128x256xf32, #tpu.memory_space<vmem>>, %arg12: memref<1x256xf32, #tpu.memory_space<vmem>>, %arg13: memref<256x64xf32, #tpu.memory_space<vmem>>, %arg14: memref<1x64xf32, #tpu.memory_space<vmem>>, %arg15: memref<8x96xf32, #tpu.memory_space<vmem>>) attributes {dimension_semantics = [#tpu.dimension_semantics<parallel>], iteration_bounds = array<i64: 1>, scalar_prefetch = 0 : i64, scratch_operands = 0 : i64, tpu.core_type = #tpu.core_type<tc>, window_params = [{transform_indices = @transform_0, window_bounds = array<i64: 8, 64>}, {transform_indices = @transform_1, window_bounds = array<i64: 8, 16>}, {pipeline_mode = #tpu.pipeline_mode<synchronous>, transform_indices = @transform_2, window_bounds = array<i64: 64, 256>}, {pipeline_mode = #tpu.pipeline_mode<synchronous>, transform_indices = @transform_3, window_bounds = array<i64: 1, 256>}, {pipeline_mode = #tpu.pipeline_mode<synchronous>, transform_indices = @transform_4, window_bounds = array<i64: 256, 128>}, {pipeline_mode = #tpu.pipeline_mode<synchronous>, transform_indices = @transform_5, window_bounds = array<i64: 1, 128>}, {pipeline_mode = #tpu.pipeline_mode<synchronous>, transform_indices = @transform_6, window_bounds = array<i64: 128, 32>}, {pipeline_mode = #tpu.pipeline_mode<synchronous>, transform_indices = @transform_7, window_bounds = array<i64: 1, 32>}, {pipeline_mode = #tpu.pipeline_mode<synchronous>, transform_indices = @transform_8, window_bounds = array<i64: 16, 128>}, {pipeline_mode = #tpu.pipeline_mode<synchronous>, transform_indices = @transform_9, window_bounds = array<i64: 1, 128>}, {pipeline_mode = #tpu.pipeline_mode<synchronous>, transform_indices = @transform_10, window_bounds = array<i64: 128, 256>}, {pipeline_mode = #tpu.pipeline_mode<synchronous>, transform_indices = @transform_11, window_bounds = array<i64: 1, 256>}, {pipeline_mode = #tpu.pipeline_mode<synchronous>, transform_indices = @transform_12, window_bounds = array<i64: 256, 64>}, {pipeline_mode = #tpu.pipeline_mode<synchronous>, transform_indices = @transform_13, window_bounds = array<i64: 1, 64>}, {transform_indices = @transform_14, window_bounds = array<i64: 8, 96>}]} {
    %c0 = arith.constant 0 : index
    %c0_0 = arith.constant 0 : index
    %0 = vector.load %arg1[%c0, %c0_0] : memref<8x64xf32, #tpu.memory_space<vmem>>, vector<8x64xf32>
    %c0_1 = arith.constant 0 : index
    %c0_2 = arith.constant 0 : index
    %1 = vector.load %arg2[%c0_1, %c0_2] : memref<8x16xf32, #tpu.memory_space<vmem>>, vector<8x16xf32>
    %c0_3 = arith.constant 0 : index
    %c0_4 = arith.constant 0 : index
    %2 = vector.load %arg3[%c0_3, %c0_4] : memref<64x256xf32, #tpu.memory_space<vmem>>, vector<64x256xf32>
    %cst = arith.constant dense<0.000000e+00> : vector<8x256xf32>
    %3 = tpu.matmul %0, %2, %cst {dimension_numbers = #tpu.dot_dimension_numbers<[1], [0], [0], [1], [0, 0, 1, 1], [], []>} : vector<8x64xf32>, vector<64x256xf32>, vector<8x256xf32> -> vector<8x256xf32>
    %c0_5 = arith.constant 0 : index
    %c0_6 = arith.constant 0 : index
    %4 = vector.load %arg4[%c0_5, %c0_6] : memref<1x256xf32, #tpu.memory_space<vmem>>, vector<1x256xf32>
    %5 = vector.broadcast %4 : vector<1x256xf32> to vector<8x256xf32>
    %6 = arith.addf %3, %5 : vector<8x256xf32>
    %cst_7 = arith.constant 0.000000e+00 : f32
    %7 = vector.broadcast %cst_7 : f32 to vector<8x256xf32>
    %8 = arith.maximumf %6, %7 : vector<8x256xf32>
    %c0_8 = arith.constant 0 : index
    %c0_9 = arith.constant 0 : index
    %9 = vector.load %arg5[%c0_8, %c0_9] : memref<256x128xf32, #tpu.memory_space<vmem>>, vector<256x128xf32>
    %cst_10 = arith.constant dense<0.000000e+00> : vector<8x128xf32>
    %10 = tpu.matmul %8, %9, %cst_10 {dimension_numbers = #tpu.dot_dimension_numbers<[1], [0], [0], [1], [0, 0, 1, 1], [], []>} : vector<8x256xf32>, vector<256x128xf32>, vector<8x128xf32> -> vector<8x128xf32>
    %c0_11 = arith.constant 0 : index
    %c0_12 = arith.constant 0 : index
    %11 = vector.load %arg6[%c0_11, %c0_12] : memref<1x128xf32, #tpu.memory_space<vmem>>, vector<1x128xf32>
    %12 = vector.broadcast %11 : vector<1x128xf32> to vector<8x128xf32>
    %13 = arith.addf %10, %12 : vector<8x128xf32>
    %cst_13 = arith.constant 0.000000e+00 : f32
    %14 = vector.broadcast %cst_13 : f32 to vector<8x128xf32>
    %15 = arith.maximumf %13, %14 : vector<8x128xf32>
    %c0_14 = arith.constant 0 : index
    %c0_15 = arith.constant 0 : index
    %16 = vector.load %arg7[%c0_14, %c0_15] : memref<128x32xf32, #tpu.memory_space<vmem>>, vector<128x32xf32>
    %cst_16 = arith.constant dense<0.000000e+00> : vector<8x32xf32>
    %17 = tpu.matmul %15, %16, %cst_16 {dimension_numbers = #tpu.dot_dimension_numbers<[1], [0], [0], [1], [0, 0, 1, 1], [], []>} : vector<8x128xf32>, vector<128x32xf32>, vector<8x32xf32> -> vector<8x32xf32>
    %c0_17 = arith.constant 0 : index
    %c0_18 = arith.constant 0 : index
    %18 = vector.load %arg8[%c0_17, %c0_18] : memref<1x32xf32, #tpu.memory_space<vmem>>, vector<1x32xf32>
    %19 = vector.broadcast %18 : vector<1x32xf32> to vector<8x32xf32>
    %20 = arith.addf %17, %19 : vector<8x32xf32>
    %21 = vector.extract_strided_slice %20 {offsets = [0, 0], sizes = [8, 16], strides = [1, 1]} : vector<8x32xf32> to vector<8x16xf32>
    %22 = vector.extract_strided_slice %20 {offsets = [0, 16], sizes = [8, 16], strides = [1, 1]} : vector<8x32xf32> to vector<8x16xf32>
    %cst_19 = arith.constant 5.000000e-01 : f32
    %23 = vector.broadcast %cst_19 : f32 to vector<8x16xf32>
    %24 = arith.mulf %23, %22 : vector<8x16xf32>
    %25 = math.exp %24 : vector<8x16xf32>
    %26 = arith.mulf %1, %25 : vector<8x16xf32>
    %27 = arith.addf %21, %26 : vector<8x16xf32>
    %c0_20 = arith.constant 0 : index
    %c0_21 = arith.constant 0 : index
    %28 = vector.load %arg9[%c0_20, %c0_21] : memref<16x128xf32, #tpu.memory_space<vmem>>, vector<16x128xf32>
    %cst_22 = arith.constant dense<0.000000e+00> : vector<8x128xf32>
    %29 = tpu.matmul %27, %28, %cst_22 {dimension_numbers = #tpu.dot_dimension_numbers<[1], [0], [0], [1], [0, 0, 1, 1], [], []>} : vector<8x16xf32>, vector<16x128xf32>, vector<8x128xf32> -> vector<8x128xf32>
    %c0_23 = arith.constant 0 : index
    %c0_24 = arith.constant 0 : index
    %30 = vector.load %arg10[%c0_23, %c0_24] : memref<1x128xf32, #tpu.memory_space<vmem>>, vector<1x128xf32>
    %31 = vector.broadcast %30 : vector<1x128xf32> to vector<8x128xf32>
    %32 = arith.addf %29, %31 : vector<8x128xf32>
    %cst_25 = arith.constant 0.000000e+00 : f32
    %33 = vector.broadcast %cst_25 : f32 to vector<8x128xf32>
    %34 = arith.maximumf %32, %33 : vector<8x128xf32>
    %c0_26 = arith.constant 0 : index
    %c0_27 = arith.constant 0 : index
    %35 = vector.load %arg11[%c0_26, %c0_27] : memref<128x256xf32, #tpu.memory_space<vmem>>, vector<128x256xf32>
    %cst_28 = arith.constant dense<0.000000e+00> : vector<8x256xf32>
    %36 = tpu.matmul %34, %35, %cst_28 {dimension_numbers = #tpu.dot_dimension_numbers<[1], [0], [0], [1], [0, 0, 1, 1], [], []>} : vector<8x128xf32>, vector<128x256xf32>, vector<8x256xf32> -> vector<8x256xf32>
    %c0_29 = arith.constant 0 : index
    %c0_30 = arith.constant 0 : index
    %37 = vector.load %arg12[%c0_29, %c0_30] : memref<1x256xf32, #tpu.memory_space<vmem>>, vector<1x256xf32>
    %38 = vector.broadcast %37 : vector<1x256xf32> to vector<8x256xf32>
    %39 = arith.addf %36, %38 : vector<8x256xf32>
    %cst_31 = arith.constant 0.000000e+00 : f32
    %40 = vector.broadcast %cst_31 : f32 to vector<8x256xf32>
    %41 = arith.maximumf %39, %40 : vector<8x256xf32>
    %c0_32 = arith.constant 0 : index
    %c0_33 = arith.constant 0 : index
    %42 = vector.load %arg13[%c0_32, %c0_33] : memref<256x64xf32, #tpu.memory_space<vmem>>, vector<256x64xf32>
    %cst_34 = arith.constant dense<0.000000e+00> : vector<8x64xf32>
    %43 = tpu.matmul %41, %42, %cst_34 {dimension_numbers = #tpu.dot_dimension_numbers<[1], [0], [0], [1], [0, 0, 1, 1], [], []>} : vector<8x256xf32>, vector<256x64xf32>, vector<8x64xf32> -> vector<8x64xf32>
    %c0_35 = arith.constant 0 : index
    %c0_36 = arith.constant 0 : index
    %44 = vector.load %arg14[%c0_35, %c0_36] : memref<1x64xf32, #tpu.memory_space<vmem>>, vector<1x64xf32>
    %45 = vector.broadcast %44 : vector<1x64xf32> to vector<8x64xf32>
    %46 = arith.addf %43, %45 : vector<8x64xf32>
    %cst_37 = arith.constant 0.000000e+00 : f32
    %47 = vector.broadcast %cst_37 : f32 to vector<8x64xf32>
    %48 = arith.maximumf %46, %47 : vector<8x64xf32>
    %49 = tpu.concatenate %48, %20 in 1 : vector<8x64xf32>, vector<8x32xf32> -> vector<8x96xf32>
    %c0_38 = arith.constant 0 : index
    %c0_39 = arith.constant 0 : index
    %50 = vector.load %arg15[%c0_38, %c0_39] : memref<8x96xf32, #tpu.memory_space<vmem>>, vector<8x96xf32>
    tpu.vector_store %arg15[%c0_38, %c0_39], %49 {strides = array<i32>} : memref<8x96xf32, #tpu.memory_space<vmem>>, vector<8x96xf32>,
    return
  }
  func.func @transform_0(%arg0: i32) -> (i32, i32) {
    %c0_i32 = arith.constant 0 : i32
    %c0_i32_0 = arith.constant 0 : i32
    return %arg0, %c0_i32 : i32, i32
  }
  func.func @transform_1(%arg0: i32) -> (i32, i32) {
    %c0_i32 = arith.constant 0 : i32
    %c0_i32_0 = arith.constant 0 : i32
    return %arg0, %c0_i32 : i32, i32
  }
  func.func @transform_2(%arg0: i32) -> (i32, i32) {
    %c0_i32 = arith.constant 0 : i32
    %c0_i32_0 = arith.constant 0 : i32
    %c0_i32_1 = arith.constant 0 : i32
    return %c0_i32, %c0_i32_0 : i32, i32
  }
  func.func @transform_3(%arg0: i32) -> (i32, i32) {
    %c0_i32 = arith.constant 0 : i32
    %c0_i32_0 = arith.constant 0 : i32
    %c0_i32_1 = arith.constant 0 : i32
    return %c0_i32, %c0_i32_0 : i32, i32
  }
  func.func @transform_4(%arg0: i32) -> (i32, i32) {
    %c0_i32 = arith.constant 0 : i32
    %c0_i32_0 = arith.constant 0 : i32
    %c0_i32_1 = arith.constant 0 : i32
    return %c0_i32, %c0_i32_0 : i32, i32
  }
  func.func @transform_5(%arg0: i32) -> (i32, i32) {
    %c0_i32 = arith.constant 0 : i32
    %c0_i32_0 = arith.constant 0 : i32
    %c0_i32_1 = arith.constant 0 : i32
    return %c0_i32, %c0_i32_0 : i32, i32
  }
  func.func @transform_6(%arg0: i32) -> (i32, i32) {
    %c0_i32 = arith.constant 0 : i32
    %c0_i32_0 = arith.constant 0 : i32
    %c0_i32_1 = arith.constant 0 : i32
    return %c0_i32, %c0_i32_0 : i32, i32
  }
  func.func @transform_7(%arg0: i32) -> (i32, i32) {
    %c0_i32 = arith.constant 0 : i32
    %c0_i32_0 = arith.constant 0 : i32
    %c0_i32_1 = arith.constant 0 : i32
    return %c0_i32, %c0_i32_0 : i32, i32
  }
  func.func @transform_8(%arg0: i32) -> (i32, i32) {
    %c0_i32 = arith.constant 0 : i32
    %c0_i32_0 = arith.constant 0 : i32
    %c0_i32_1 = arith.constant 0 : i32
    return %c0_i32, %c0_i32_0 : i32, i32
  }
  func.func @transform_9(%arg0: i32) -> (i32, i32) {
    %c0_i32 = arith.constant 0 : i32
    %c0_i32_0 = arith.constant 0 : i32
    %c0_i32_1 = arith.constant 0 : i32
    return %c0_i32, %c0_i32_0 : i32, i32
  }
  func.func @transform_10(%arg0: i32) -> (i32, i32) {
    %c0_i32 = arith.constant 0 : i32
    %c0_i32_0 = arith.constant 0 : i32
    %c0_i32_1 = arith.constant 0 : i32
    return %c0_i32, %c0_i32_0 : i32, i32
  }
  func.func @transform_11(%arg0: i32) -> (i32, i32) {
    %c0_i32 = arith.constant 0 : i32
    %c0_i32_0 = arith.constant 0 : i32
    %c0_i32_1 = arith.constant 0 : i32
    return %c0_i32, %c0_i32_0 : i32, i32
  }
  func.func @transform_12(%arg0: i32) -> (i32, i32) {
    %c0_i32 = arith.constant 0 : i32
    %c0_i32_0 = arith.constant 0 : i32
    %c0_i32_1 = arith.constant 0 : i32
    return %c0_i32, %c0_i32_0 : i32, i32
  }
  func.func @transform_13(%arg0: i32) -> (i32, i32) {
    %c0_i32 = arith.constant 0 : i32
    %c0_i32_0 = arith.constant 0 : i32
    %c0_i32_1 = arith.constant 0 : i32
    return %c0_i32, %c0_i32_0 : i32, i32
  }
  func.func @transform_14(%arg0: i32) -> (i32, i32) {
    %c0_i32 = arith.constant 0 : i32
    %c0_i32_0 = arith.constant 0 : i32
    return %arg0, %c0_i32 : i32, i32
  }
}

</mosaic_0001>

<llo_original>
// kernel: tpu_custom_call.1
$region0: #{tpu_custom_call.1}
  #allocation0 [shape = 'u32[]', space=smem, size = 0x4, offset = 0x4, fixed_abs, tag = 'smem constant byte address 0x4 - core index']
  #allocation1 [shape = 'u32[144,128]{1,0:T(1,128)}', space=vmem, size = 0x12000, scoped, tag = 'internal scratch']
  %s0 = inlined_call_operand.vmem [shape: f32[8,64], index: 0, kind: input, shape index: {}]
  %s1 = inlined_call_operand.vmem [shape: f32[8,16], index: 1, kind: input, shape index: {}]
  %s2 = inlined_call_operand.hbm [shape: f32[64,256], index: 2, kind: input, shape index: {}]
  %s3 = inlined_call_operand.vmem [shape: f32[1,256], index: 3, kind: input, shape index: {}]
  %s4 = inlined_call_operand.vmem [shape: f32[256,128], index: 4, kind: input, shape index: {}]
  %s5 = inlined_call_operand.vmem [shape: f32[1,128], index: 5, kind: input, shape index: {}]
  %s6 = inlined_call_operand.vmem [shape: f32[128,32], index: 6, kind: input, shape index: {}]
  %s7 = inlined_call_operand.vmem [shape: f32[1,32], index: 7, kind: input, shape index: {}]
  %s8 = inlined_call_operand.vmem [shape: f32[16,128], index: 8, kind: input, shape index: {}]
  %s9 = inlined_call_operand.vmem [shape: f32[1,128], index: 9, kind: input, shape index: {}]
  %s10 = inlined_call_operand.vmem [shape: f32[128,256], index: 10, kind: input, shape index: {}]
  %s11 = inlined_call_operand.vmem [shape: f32[1,256], index: 11, kind: input, shape index: {}]
  %s12 = inlined_call_operand.vmem [shape: f32[256,64], index: 12, kind: input, shape index: {}]
  %s13 = inlined_call_operand.vmem [shape: f32[1,64], index: 13, kind: input, shape index: {}]
  %s14 = inlined_call_operand.hbm [shape: f32[8,96], index: 14, kind: output, shape index: {}]
  %s15 = sld [smem:[#allocation0]]
  $region70: #{tpu_custom_call.1} parent=0
    _
  %s17 = ssub.s32 1, %s15
  %s18 = scalar_select 0, %s17, %s15
  $region1: #{tpu_custom_call.1} parent=0
    #allocation2 [shape = 'u8[65536]{0}', space=vmem, size = 0x10000, scoped, tag = 'input window, operand 2, single buffered']
    #allocation3 [shape = 's32[1]{0}', space=sflag, size = 0x4, scoped, tag = 'scoped memory for tpu_custom_call.1']
    #allocation4 [shape = 's32[1]{0}', space=sflag, size = 0x4, scoped, tag = 'scoped memory for tpu_custom_call.1']
    #allocation5 [shape = 'u8[4096]{0}', space=vmem, size = 0x1000, scoped, tag = 'output window, operand 0, single buffered']
    %19 = vsyncpa [#allocation3], 0
    %20 = vsyncpa [#allocation4], 0
    // Predicated region
    $region2: #{tpu_custom_call.1} parent=1 // pred_check
      _
    $region3: #{tpu_custom_call.1} parent=1 // pred_check_branch
      %22 = sbr.rel (0) target = $region5
    $region4: #{tpu_custom_call.1} parent=1 // pred_region
      _
    $region5: #{tpu_custom_call.1} parent=1 // pred_fallthru
      _
    // Predicated region
    $region6: #{tpu_custom_call.1} parent=1 // pred_check
      _
    $region7: #{tpu_custom_call.1} parent=1 // pred_check_branch
      %24 = sbr.rel (0) target = $region9
    $region8: #{tpu_custom_call.1} parent=1 // pred_region
      _
    $region9: #{tpu_custom_call.1} parent=1 // pred_fallthru
      _
    // Predicated region
    $region10: #{tpu_custom_call.1} parent=1 // pred_check
      _
    $region11: #{tpu_custom_call.1} parent=1 // pred_check_branch
      %26 = sbr.rel (0) target = $region13
    $region12: #{tpu_custom_call.1} parent=1 // pred_region
      %s28 = ssub.s32 2048, 2048
      %29 = vsyncadd [#allocation3], %s28
      %s30 = sshll.u32 [#allocation2], 4
      %s31 = int_to_ptr.vmem [resolvable:$true] %s30
      %36 = dma.hbm_to_vmem [thread:$0]  %s2, 2048, %s31, [#allocation3], 256, 256, 16
    $region13: #{tpu_custom_call.1} parent=1 // pred_fallthru
      _
    // Predicated region
    $region14: #{tpu_custom_call.1} parent=1 // pred_check
      _
    $region15: #{tpu_custom_call.1} parent=1 // pred_check_branch
      %38 = sbr.rel (0) target = $region17
    $region16: #{tpu_custom_call.1} parent=1 // pred_region
      _
    $region17: #{tpu_custom_call.1} parent=1 // pred_fallthru
      _
    // Predicated region
    $region18: #{tpu_custom_call.1} parent=1 // pred_check
      _
    $region19: #{tpu_custom_call.1} parent=1 // pred_check_branch
      %40 = sbr.rel (0) target = $region21
    $region20: #{tpu_custom_call.1} parent=1 // pred_region
      _
    $region21: #{tpu_custom_call.1} parent=1 // pred_fallthru
      _
    // Predicated region
    $region22: #{tpu_custom_call.1} parent=1 // pred_check
      _
    $region23: #{tpu_custom_call.1} parent=1 // pred_check_branch
      %42 = sbr.rel (0) target = $region25
    $region24: #{tpu_custom_call.1} parent=1 // pred_region
      _
    $region25: #{tpu_custom_call.1} parent=1 // pred_fallthru
      _
    // Predicated region
    $region26: #{tpu_custom_call.1} parent=1 // pred_check
      _
    $region27: #{tpu_custom_call.1} parent=1 // pred_check_branch
      %44 = sbr.rel (0) target = $region29
    $region28: #{tpu_custom_call.1} parent=1 // pred_region
      _
    $region29: #{tpu_custom_call.1} parent=1 // pred_fallthru
      _
    // Predicated region
    $region30: #{tpu_custom_call.1} parent=1 // pred_check
      _
    $region31: #{tpu_custom_call.1} parent=1 // pred_check_branch
      %46 = sbr.rel (0) target = $region33
    $region32: #{tpu_custom_call.1} parent=1 // pred_region
      _
    $region33: #{tpu_custom_call.1} parent=1 // pred_fallthru
      _
    // Predicated region
    $region34: #{tpu_custom_call.1} parent=1 // pred_check
      _
    $region35: #{tpu_custom_call.1} parent=1 // pred_check_branch
      %48 = sbr.rel (0) target = $region37
    $region36: #{tpu_custom_call.1} parent=1 // pred_region
      _
    $region37: #{tpu_custom_call.1} parent=1 // pred_fallthru
      _
    // Predicated region
    $region38: #{tpu_custom_call.1} parent=1 // pred_check
      _
    $region39: #{tpu_custom_call.1} parent=1 // pred_check_branch
      %50 = sbr.rel (0) target = $region41
    $region40: #{tpu_custom_call.1} parent=1 // pred_region
      _
    $region41: #{tpu_custom_call.1} parent=1 // pred_fallthru
      _
    // Predicated region
    $region42: #{tpu_custom_call.1} parent=1 // pred_check
      _
    $region43: #{tpu_custom_call.1} parent=1 // pred_check_branch
      %52 = sbr.rel (0) target = $region45
    $region44: #{tpu_custom_call.1} parent=1 // pred_region
      _
    $region45: #{tpu_custom_call.1} parent=1 // pred_fallthru
      _
    // Predicated region
    $region46: #{tpu_custom_call.1} parent=1 // pred_check
      _
    $region47: #{tpu_custom_call.1} parent=1 // pred_check_branch
      %54 = sbr.rel (0) target = $region49
    $region48: #{tpu_custom_call.1} parent=1 // pred_region
      _
    $region49: #{tpu_custom_call.1} parent=1 // pred_fallthru
      _
    // Predicated region
    $region50: #{tpu_custom_call.1} parent=1 // pred_check
      _
    $region51: #{tpu_custom_call.1} parent=1 // pred_check_branch
      %56 = sbr.rel (0) target = $region53
    $region52: #{tpu_custom_call.1} parent=1 // pred_region
      _
    $region53: #{tpu_custom_call.1} parent=1 // pred_fallthru
      _
    // Predicated region
    $region54: #{tpu_custom_call.1} parent=1 // pred_check
      _
    $region55: #{tpu_custom_call.1} parent=1 // pred_check_branch
      %58 = sbr.rel (0) target = $region57
    $region56: #{tpu_custom_call.1} parent=1 // pred_region
      _
    $region57: #{tpu_custom_call.1} parent=1 // pred_fallthru
      _
    // Predicated region
    $region58: #{tpu_custom_call.1} parent=1 // pred_check
      _
    $region59: #{tpu_custom_call.1} parent=1 // pred_check_branch
      %60 = sbr.rel (0) target = $region61
    $region60: #{tpu_custom_call.1} parent=1 // pred_region
      %61 = dma.done [#allocation3], 2048
    $region61: #{tpu_custom_call.1} parent=1 // pred_fallthru
      _
    %v62 = vld [vmem:[%s0] sm:$0xff]
    %v63 = vld [vmem:[%s1] sm:$0xff]
    %v64 = vld [vmem:[#allocation2] sm:$0xff]
    %v65 = vld [vmem:[#allocation2 + $0x8] sm:$0xff]
    %v66 = vld [vmem:[#allocation2 + $0x10] sm:$0xff]
    %v67 = vld [vmem:[#allocation2 + $0x18] sm:$0xff]
    %v68 = vld [vmem:[#allocation2 + $0x20] sm:$0xff]
    %v69 = vld [vmem:[#allocation2 + $0x28] sm:$0xff]
    %v70 = vld [vmem:[#allocation2 + $0x30] sm:$0xff]
    %v71 = vld [vmem:[#allocation2 + $0x38] sm:$0xff]
    %v72 = vld [vmem:[#allocation2 + $0x40] sm:$0xff]
    %v73 = vld [vmem:[#allocation2 + $0x48] sm:$0xff]
    %v74 = vld [vmem:[#allocation2 + $0x50] sm:$0xff]
    %v75 = vld [vmem:[#allocation2 + $0x58] sm:$0xff]
    %v76 = vld [vmem:[#allocation2 + $0x60] sm:$0xff]
    %v77 = vld [vmem:[#allocation2 + $0x68] sm:$0xff]
    %v78 = vld [vmem:[#allocation2 + $0x70] sm:$0xff]
    %v79 = vld [vmem:[#allocation2 + $0x78] sm:$0xff]
    %v80 = vld [vmem:[%s3] sm:$0x3]
    %v82 = vlaneseq
    %v83 = vshrl.u32 %v82, 7
    %v84 = vsub.s32 0, %v83
    %v85 = vrot.slane %v80, %v84
    %v86 = vlaneseq
    %v87 = vshrl.u32 %v86, 7
    %v88 = vsub.s32 1, %v87
    %v89 = vrot.slane %v80, %v88
    %vm92 = vcmask 523264
    %v94 = vsel %vm92, %v62, 0
    %96 = vmatprep.subr.mxu0 %v65
    %97 = vmatpush1.msra.mxu0 %v64
    %98 = vmatprep.subr.mxu0 %v67
    %99 = vmatpush1.msra.mxu0 %v66
    %100 = vmatprep.subr.mxu0 %v69
    %101 = vmatpush1.msra.mxu0 %v68
    %102 = vmatprep.subr.mxu0 %v71
    %103 = vmatpush1.msra.mxu0 %v70
    %104 = vmatprep.subr.mxu0 %v73
    %105 = vmatpush1.msra.mxu0 %v72
    %106 = vmatprep.subr.mxu0 %v75
    %107 = vmatpush1.msra.mxu0 %v74
    %108 = vmatprep.subr.mxu0 %v77
    %109 = vmatpush1.msra.mxu0 %v76
    %110 = vmatprep.subr.mxu0 %v79
    %111 = vmatpush1.msra.mxu0 %v78
    %112 = vmatprep.subr.mxu0 0.0
    %113 = vmatpush1.msra.mxu0 0.0
    %114 = vmatprep.subr.mxu0 0.0
    %115 = vmatpush1.msra.mxu0 0.0
    %116 = vmatprep.subr.mxu0 0.0
    %117 = vmatpush1.msra.mxu0 0.0
    %118 = vmatprep.subr.mxu0 0.0
    %119 = vmatpush1.msra.mxu0 0.0
    %120 = vmatprep.subr.mxu0 0.0
    %121 = vmatpush1.msra.mxu0 0.0
    %122 = vmatprep.subr.mxu0 0.0
    %123 = vmatpush1.msra.mxu0 0.0
    %124 = vmatprep.subr.mxu0 0.0
    %125 = vmatpush1.msra.mxu0 0.0
    %126 = vmatprep.subr.mxu0 0.0
    %127 = vmatpush1.msra.mxu0 0.0
    %128 = vmatprep.subr.mxu0 0.0
    %129 = vmatpush1.msra.mxu0 0.0
    %130 = vmatprep.subr.mxu0 0.0
    %131 = vmatpush1.msra.mxu0 0.0
    %132 = vmatprep.subr.mxu0 0.0
    %133 = vmatpush1.msra.mxu0 0.0
    %134 = vmatprep.subr.mxu0 0.0
    %135 = vmatpush1.msra.mxu0 0.0
    %136 = vmatprep.subr.mxu0 0.0
    %137 = vmatpush1.msra.mxu0 0.0
    %138 = vmatprep.subr.mxu0 0.0
    %139 = vmatpush1.msra.mxu0 0.0
    %140 = vmatprep.subr.mxu0 0.0
    %141 = vmatpush1.msra.mxu0 0.0
    %142 = vmatprep.subr.mxu0 0.0
    %143 = vmatpush1.msra.mxu0 0.0
    %144 = vmatprep.subr.mxu0 0.0
    %145 = vmatpush1.msra.mxu0 0.0
    %146 = vmatprep.subr.mxu0 0.0
    %147 = vmatpush1.msra.mxu0 0.0
    %148 = vmatprep.subr.mxu0 0.0
    %149 = vmatpush1.msra.mxu0 0.0
    %150 = vmatprep.subr.mxu0 0.0
    %151 = vmatpush1.msra.mxu0 0.0
    %152 = vmatprep.subr.mxu0 0.0
    %153 = vmatpush1.msra.mxu0 0.0
    %154 = vmatprep.subr.mxu0 0.0
    %155 = vmatpush1.msra.mxu0 0.0
    %156 = vmatprep.subr.mxu0 0.0
    %157 = vmatpush1.msra.mxu0 0.0
    %158 = vmatprep.subr.mxu0 0.0
    %159 = vmatpush1.msra.mxu0 0.0
    %160 = vmatprep.mubr.f32.mxu0 0.0
    %161 = vmatmul.mubr.f32.gmra.mrb[0].mxu0 %v94
    %v162 = vpop.f32.mrb[0].mxu0
    %v163 = vadd.f32 %v85, %v162
    %v164 = vpop.f32.mrb[0].mxu0
    %v165 = vadd.f32 %v89, %v164
    %166 = vdwg.mxu0
    %v167 = vmax.f32 %v163, 0.0
    %v168 = vmax.f32 %v165, 0.0
    %v169 = vld [vmem:[%s4] sm:$0xff]
    %v170 = vld [vmem:[%s4 + $0x8] sm:$0xff]
    %v171 = vld [vmem:[%s4 + $0x10] sm:$0xff]
    %v172 = vld [vmem:[%s4 + $0x18] sm:$0xff]
    %v173 = vld [vmem:[%s4 + $0x20] sm:$0xff]
    %v174 = vld [vmem:[%s4 + $0x28] sm:$0xff]
    %v175 = vld [vmem:[%s4 + $0x30] sm:$0xff]
    %v176 = vld [vmem:[%s4 + $0x38] sm:$0xff]
    %v177 = vld [vmem:[%s4 + $0x40] sm:$0xff]
    %v178 = vld [vmem:[%s4 + $0x48] sm:$0xff]
    %v179 = vld [vmem:[%s4 + $0x50] sm:$0xff]
    %v180 = vld [vmem:[%s4 + $0x58] sm:$0xff]
    %v181 = vld [vmem:[%s4 + $0x60] sm:$0xff]
    %v182 = vld [vmem:[%s4 + $0x68] sm:$0xff]
    %v183 = vld [vmem:[%s4 + $0x70] sm:$0xff]
    %v184 = vld [vmem:[%s4 + $0x78] sm:$0xff]
    %v185 = vld [vmem:[%s4 + $0x80] sm:$0xff]
    %v186 = vld [vmem:[%s4 + $0x88] sm:$0xff]
    %v187 = vld [vmem:[%s4 + $0x90] sm:$0xff]
    %v188 = vld [vmem:[%s4 + $0x98] sm:$0xff]
    %v189 = vld [vmem:[%s4 + $0xa0] sm:$0xff]
    %v190 = vld [vmem:[%s4 + $0xa8] sm:$0xff]
    %v191 = vld [vmem:[%s4 + $0xb0] sm:$0xff]
    %v192 = vld [vmem:[%s4 + $0xb8] sm:$0xff]
    %v193 = vld [vmem:[%s4 + $0xc0] sm:$0xff]
    %v194 = vld [vmem:[%s4 + $0xc8] sm:$0xff]
    %v195 = vld [vmem:[%s4 + $0xd0] sm:$0xff]
    %v196 = vld [vmem:[%s4 + $0xd8] sm:$0xff]
    %v197 = vld [vmem:[%s4 + $0xe0] sm:$0xff]
    %v198 = vld [vmem:[%s4 + $0xe8] sm:$0xff]
    %v199 = vld [vmem:[%s4 + $0xf0] sm:$0xff]
    %v200 = vld [vmem:[%s4 + $0xf8] sm:$0xff]
    %v201 = vld [vmem:[%s5] sm:$0x1]
    %v203 = vlaneseq
    %v204 = vshrl.u32 %v203, 7
    %v205 = vsub.s32 0, %v204
    %v206 = vrot.slane %v201, %v205
    %208 = vmatprep.subr.mxu0 0.0
    %209 = vmatpush1.msra.mxu0 %v169
    %210 = vmatprep.subr.mxu0 0.0
    %211 = vmatpush1.msra.mxu0 %v170
    %212 = vmatprep.subr.mxu0 0.0
    %213 = vmatpush1.msra.mxu0 %v171
    %214 = vmatprep.subr.mxu0 0.0
    %215 = vmatpush1.msra.mxu0 %v172
    %216 = vmatprep.subr.mxu0 0.0
    %217 = vmatpush1.msra.mxu0 %v173
    %218 = vmatprep.subr.mxu0 0.0
    %219 = vmatpush1.msra.mxu0 %v174
    %220 = vmatprep.subr.mxu0 0.0
    %221 = vmatpush1.msra.mxu0 %v175
    %222 = vmatprep.subr.mxu0 0.0
    %223 = vmatpush1.msra.mxu0 %v176
    %224 = vmatprep.subr.mxu0 0.0
    %225 = vmatpush1.msra.mxu0 %v177
    %226 = vmatprep.subr.mxu0 0.0
    %227 = vmatpush1.msra.mxu0 %v178
    %228 = vmatprep.subr.mxu0 0.0
    %229 = vmatpush1.msra.mxu0 %v179
    %230 = vmatprep.subr.mxu0 0.0
    %231 = vmatpush1.msra.mxu0 %v180
    %232 = vmatprep.subr.mxu0 0.0
    %233 = vmatpush1.msra.mxu0 %v181
    %234 = vmatprep.subr.mxu0 0.0
    %235 = vmatpush1.msra.mxu0 %v182
    %236 = vmatprep.subr.mxu0 0.0
    %237 = vmatpush1.msra.mxu0 %v183
    %238 = vmatprep.subr.mxu0 0.0
    %239 = vmatpush1.msra.mxu0 %v184
    %240 = vmatprep.subr.mxu0 0.0
    %241 = vmatpush1.msra.mxu0 %v185
    %242 = vmatprep.subr.mxu0 0.0
    %243 = vmatpush1.msra.mxu0 %v186
    %244 = vmatprep.subr.mxu0 0.0
    %245 = vmatpush1.msra.mxu0 %v187
    %246 = vmatprep.subr.mxu0 0.0
    %247 = vmatpush1.msra.mxu0 %v188
    %248 = vmatprep.subr.mxu0 0.0
    %249 = vmatpush1.msra.mxu0 %v189
    %250 = vmatprep.subr.mxu0 0.0
    %251 = vmatpush1.msra.mxu0 %v190
    %252 = vmatprep.subr.mxu0 0.0
    %253 = vmatpush1.msra.mxu0 %v191
    %254 = vmatprep.subr.mxu0 0.0
    %255 = vmatpush1.msra.mxu0 %v192
    %256 = vmatprep.subr.mxu0 0.0
    %257 = vmatpush1.msra.mxu0 %v193
    %258 = vmatprep.subr.mxu0 0.0
    %259 = vmatpush1.msra.mxu0 %v194
    %260 = vmatprep.subr.mxu0 0.0
    %261 = vmatpush1.msra.mxu0 %v195
    %262 = vmatprep.subr.mxu0 0.0
    %263 = vmatpush1.msra.mxu0 %v196
    %264 = vmatprep.subr.mxu0 0.0
    %265 = vmatpush1.msra.mxu0 %v197
    %266 = vmatprep.subr.mxu0 0.0
    %267 = vmatpush1.msra.mxu0 %v198
    %268 = vmatprep.subr.mxu0 0.0
    %269 = vmatpush1.msra.mxu0 %v199
    %270 = vmatprep.subr.mxu0 0.0
    %271 = vmatpush1.msra.mxu0 %v200
    %272 = vmatprep.mubr.f32.mxu0 %v168
    %273 = vmatmul.mubr.f32.gmra.mrb[0].mxu0 %v167
    %v274 = vpop.f32.mrb[0].mxu0
    %v275 = vadd.f32 %v206, %v274
    %v276 = vpop.f32.mrb[0].mxu0
    %277 = vdwg.mxu0
    %v278 = vmax.f32 %v275, 0.0
    %v279 = vld [vmem:[%s6] sm:$0xff]
    %v280 = vld [vmem:[%s6 + $0x8] sm:$0xff]
    %v281 = vld [vmem:[%s6 + $0x10] sm:$0xff]
    %v282 = vld [vmem:[%s6 + $0x18] sm:$0xff]
    %v283 = vld [vmem:[%s6 + $0x20] sm:$0xff]
    %v284 = vld [vmem:[%s6 + $0x28] sm:$0xff]
    %v285 = vld [vmem:[%s6 + $0x30] sm:$0xff]
    %v286 = vld [vmem:[%s6 + $0x38] sm:$0xff]
    %v287 = vld [vmem:[%s6 + $0x40] sm:$0xff]
    %v288 = vld [vmem:[%s6 + $0x48] sm:$0xff]
    %v289 = vld [vmem:[%s6 + $0x50] sm:$0xff]
    %v290 = vld [vmem:[%s6 + $0x58] sm:$0xff]
    %v291 = vld [vmem:[%s6 + $0x60] sm:$0xff]
    %v292 = vld [vmem:[%s6 + $0x68] sm:$0xff]
    %v293 = vld [vmem:[%s6 + $0x70] sm:$0xff]
    %v294 = vld [vmem:[%s6 + $0x78] sm:$0xff]
    %v295 = vld [vmem:[%s7] sm:$0x1]
    %v297 = vlaneseq
    %v298 = vshrl.u32 %v297, 7
    %v299 = vsub.s32 0, %v298
    %v300 = vrot.slane %v295, %v299
    %302 = vmatprep.subr.mxu0 0.0
    %303 = vmatpush1.msra.mxu0 %v279
    %304 = vmatprep.subr.mxu0 0.0
    %305 = vmatpush1.msra.mxu0 %v280
    %306 = vmatprep.subr.mxu0 0.0
    %307 = vmatpush1.msra.mxu0 %v281
    %308 = vmatprep.subr.mxu0 0.0
    %309 = vmatpush1.msra.mxu0 %v282
    %310 = vmatprep.subr.mxu0 0.0
    %311 = vmatpush1.msra.mxu0 %v283
    %312 = vmatprep.subr.mxu0 0.0
    %313 = vmatpush1.msra.mxu0 %v284
    %314 = vmatprep.subr.mxu0 0.0
    %315 = vmatpush1.msra.mxu0 %v285
    %316 = vmatprep.subr.mxu0 0.0
    %317 = vmatpush1.msra.mxu0 %v286
    %318 = vmatprep.subr.mxu0 0.0
    %319 = vmatpush1.msra.mxu0 %v287
    %320 = vmatprep.subr.mxu0 0.0
    %321 = vmatpush1.msra.mxu0 %v288
    %322 = vmatprep.subr.mxu0 0.0
    %323 = vmatpush1.msra.mxu0 %v289
    %324 = vmatprep.subr.mxu0 0.0
    %325 = vmatpush1.msra.mxu0 %v290
    %326 = vmatprep.subr.mxu0 0.0
    %327 = vmatpush1.msra.mxu0 %v291
    %328 = vmatprep.subr.mxu0 0.0
    %329 = vmatpush1.msra.mxu0 %v292
    %330 = vmatprep.subr.mxu0 0.0
    %331 = vmatpush1.msra.mxu0 %v293
    %332 = vmatprep.subr.mxu0 0.0
    %333 = vmatpush1.msra.mxu0 %v294
    %334 = vmatprep.subr.mxu0 0.0
    %335 = vmatpush1.msra.mxu0 0.0
    %336 = vmatprep.subr.mxu0 0.0
    %337 = vmatpush1.msra.mxu0 0.0
    %338 = vmatprep.subr.mxu0 0.0
    %339 = vmatpush1.msra.mxu0 0.0
    %340 = vmatprep.subr.mxu0 0.0
    %341 = vmatpush1.msra.mxu0 0.0
    %342 = vmatprep.subr.mxu0 0.0
    %343 = vmatpush1.msra.mxu0 0.0
    %344 = vmatprep.subr.mxu0 0.0
    %345 = vmatpush1.msra.mxu0 0.0
    %346 = vmatprep.subr.mxu0 0.0
    %347 = vmatpush1.msra.mxu0 0.0
    %348 = vmatprep.subr.mxu0 0.0
    %349 = vmatpush1.msra.mxu0 0.0
    %350 = vmatprep.subr.mxu0 0.0
    %351 = vmatpush1.msra.mxu0 0.0
    %352 = vmatprep.subr.mxu0 0.0
    %353 = vmatpush1.msra.mxu0 0.0
    %354 = vmatprep.subr.mxu0 0.0
    %355 = vmatpush1.msra.mxu0 0.0
    %356 = vmatprep.subr.mxu0 0.0
    %357 = vmatpush1.msra.mxu0 0.0
    %358 = vmatprep.subr.mxu0 0.0
    %359 = vmatpush1.msra.mxu0 0.0
    %360 = vmatprep.subr.mxu0 0.0
    %361 = vmatpush1.msra.mxu0 0.0
    %362 = vmatprep.subr.mxu0 0.0
    %363 = vmatpush1.msra.mxu0 0.0
    %364 = vmatprep.subr.mxu0 0.0
    %365 = vmatpush1.msra.mxu0 0.0
    %366 = vmatprep.mubr.f32.mxu0 0.0
    %367 = vmatmul.mubr.f32.gmra.mrb[0].mxu0 %v278
    %v368 = vpop.f32.mrb[0].mxu0
    %v369 = vadd.f32 %v300, %v368
    %v370 = vpop.f32.mrb[0].mxu0
    %371 = vdwg.mxu0
    %v372 = vmul.f32 %v369, 0.5
    %v373 = vmul.f32 %v372, 1.442695
    %v374 = vpow.pop %v373
    %376 = vrot.lane.b32.xlu0 %v374, 112
    %v377 = vpop.permute.xlu0 %376
    %v379 = vmul.f32 %v63, %v377
    %v380 = vadd.f32 %v369, %v379
    %v381 = vld [vmem:[%s8] sm:$0xff]
    %v382 = vld [vmem:[%s8 + $0x8] sm:$0xff]
    %v383 = vld [vmem:[%s9] sm:$0x1]
    %v385 = vlaneseq
    %v386 = vshrl.u32 %v385, 7
    %v387 = vsub.s32 0, %v386
    %v388 = vrot.slane %v383, %v387
    %vm390 = vcmask 130048
    %v392 = vsel %vm390, %v380, 0
    %394 = vmatprep.subr.mxu0 0.0
    %395 = vmatpush1.msra.mxu0 %v381
    %396 = vmatprep.subr.mxu0 0.0
    %397 = vmatpush1.msra.mxu0 %v382
    %398 = vmatprep.subr.mxu0 0.0
    %399 = vmatpush1.msra.mxu0 0.0
    %400 = vmatprep.subr.mxu0 0.0
    %401 = vmatpush1.msra.mxu0 0.0
    %402 = vmatprep.subr.mxu0 0.0
    %403 = vmatpush1.msra.mxu0 0.0
    %404 = vmatprep.subr.mxu0 0.0
    %405 = vmatpush1.msra.mxu0 0.0
    %406 = vmatprep.subr.mxu0 0.0
    %407 = vmatpush1.msra.mxu0 0.0
    %408 = vmatprep.subr.mxu0 0.0
    %409 = vmatpush1.msra.mxu0 0.0
    %410 = vmatprep.subr.mxu0 0.0
    %411 = vmatpush1.msra.mxu0 0.0
    %412 = vmatprep.subr.mxu0 0.0
    %413 = vmatpush1.msra.mxu0 0.0
    %414 = vmatprep.subr.mxu0 0.0
    %415 = vmatpush1.msra.mxu0 0.0
    %416 = vmatprep.subr.mxu0 0.0
    %417 = vmatpush1.msra.mxu0 0.0
    %418 = vmatprep.subr.mxu0 0.0
    %419 = vmatpush1.msra.mxu0 0.0
    %420 = vmatprep.subr.mxu0 0.0
    %421 = vmatpush1.msra.mxu0 0.0
    %422 = vmatprep.subr.mxu0 0.0
    %423 = vmatpush1.msra.mxu0 0.0
    %424 = vmatprep.subr.mxu0 0.0
    %425 = vmatpush1.msra.mxu0 0.0
    %426 = vmatprep.subr.mxu0 0.0
    %427 = vmatpush1.msra.mxu0 0.0
    %428 = vmatprep.subr.mxu0 0.0
    %429 = vmatpush1.msra.mxu0 0.0
    %430 = vmatprep.subr.mxu0 0.0
    %431 = vmatpush1.msra.mxu0 0.0
    %432 = vmatprep.subr.mxu0 0.0
    %433 = vmatpush1.msra.mxu0 0.0
    %434 = vmatprep.subr.mxu0 0.0
    %435 = vmatpush1.msra.mxu0 0.0
    %436 = vmatprep.subr.mxu0 0.0
    %437 = vmatpush1.msra.mxu0 0.0
    %438 = vmatprep.subr.mxu0 0.0
    %439 = vmatpush1.msra.mxu0 0.0
    %440 = vmatprep.subr.mxu0 0.0
    %441 = vmatpush1.msra.mxu0 0.0
    %442 = vmatprep.subr.mxu0 0.0
    %443 = vmatpush1.msra.mxu0 0.0
    %444 = vmatprep.subr.mxu0 0.0
    %445 = vmatpush1.msra.mxu0 0.0
    %446 = vmatprep.subr.mxu0 0.0
    %447 = vmatpush1.msra.mxu0 0.0
    %448 = vmatprep.subr.mxu0 0.0
    %449 = vmatpush1.msra.mxu0 0.0
    %450 = vmatprep.subr.mxu0 0.0
    %451 = vmatpush1.msra.mxu0 0.0
    %452 = vmatprep.subr.mxu0 0.0
    %453 = vmatpush1.msra.mxu0 0.0
    %454 = vmatprep.subr.mxu0 0.0
    %455 = vmatpush1.msra.mxu0 0.0
    %456 = vmatprep.subr.mxu0 0.0
    %457 = vmatpush1.msra.mxu0 0.0
    %458 = vmatprep.mubr.f32.mxu0 0.0
    %459 = vmatmul.mubr.f32.gmra.mrb[0].mxu0 %v392
    %v460 = vpop.f32.mrb[0].mxu0
    %v461 = vadd.f32 %v388, %v460
    %v462 = vpop.f32.mrb[0].mxu0
    %463 = vdwg.mxu0
    %v464 = vmax.f32 %v461, 0.0
    %v465 = vld [vmem:[%s10] sm:$0xff]
    %v466 = vld [vmem:[%s10 + $0x8] sm:$0xff]
    %v467 = vld [vmem:[%s10 + $0x10] sm:$0xff]
    %v468 = vld [vmem:[%s10 + $0x18] sm:$0xff]
    %v469 = vld [vmem:[%s10 + $0x20] sm:$0xff]
    %v470 = vld [vmem:[%s10 + $0x28] sm:$0xff]
    %v471 = vld [vmem:[%s10 + $0x30] sm:$0xff]
    %v472 = vld [vmem:[%s10 + $0x38] sm:$0xff]
    %v473 = vld [vmem:[%s10 + $0x40] sm:$0xff]
    %v474 = vld [vmem:[%s10 + $0x48] sm:$0xff]
    %v475 = vld [vmem:[%s10 + $0x50] sm:$0xff]
    %v476 = vld [vmem:[%s10 + $0x58] sm:$0xff]
    %v477 = vld [vmem:[%s10 + $0x60] sm:$0xff]
    %v478 = vld [vmem:[%s10 + $0x68] sm:$0xff]
    %v479 = vld [vmem:[%s10 + $0x70] sm:$0xff]
    %v480 = vld [vmem:[%s10 + $0x78] sm:$0xff]
    %v481 = vld [vmem:[%s10 + $0x80] sm:$0xff]
    %v482 = vld [vmem:[%s10 + $0x88] sm:$0xff]
    %v483 = vld [vmem:[%s10 + $0x90] sm:$0xff]
    %v484 = vld [vmem:[%s10 + $0x98] sm:$0xff]
    %v485 = vld [vmem:[%s10 + $0xa0] sm:$0xff]
    %v486 = vld [vmem:[%s10 + $0xa8] sm:$0xff]
    %v487 = vld [vmem:[%s10 + $0xb0] sm:$0xff]
    %v488 = vld [vmem:[%s10 + $0xb8] sm:$0xff]
    %v489 = vld [vmem:[%s10 + $0xc0] sm:$0xff]
    %v490 = vld [vmem:[%s10 + $0xc8] sm:$0xff]
    %v491 = vld [vmem:[%s10 + $0xd0] sm:$0xff]
    %v492 = vld [vmem:[%s10 + $0xd8] sm:$0xff]
    %v493 = vld [vmem:[%s10 + $0xe0] sm:$0xff]
    %v494 = vld [vmem:[%s10 + $0xe8] sm:$0xff]
    %v495 = vld [vmem:[%s10 + $0xf0] sm:$0xff]
    %v496 = vld [vmem:[%s10 + $0xf8] sm:$0xff]
    %v497 = vld [vmem:[%s11] sm:$0x3]
    %v499 = vlaneseq
    %v500 = vshrl.u32 %v499, 7
    %v501 = vsub.s32 0, %v500
    %v502 = vrot.slane %v497, %v501
    %v503 = vlaneseq
    %v504 = vshrl.u32 %v503, 7
    %v505 = vsub.s32 1, %v504
    %v506 = vrot.slane %v497, %v505
    %509 = vmatprep.subr.mxu0 %v466
    %510 = vmatpush1.msra.mxu0 %v465
    %511 = vmatprep.subr.mxu0 %v468
    %512 = vmatpush1.msra.mxu0 %v467
    %513 = vmatprep.subr.mxu0 %v470
    %514 = vmatpush1.msra.mxu0 %v469
    %515 = vmatprep.subr.mxu0 %v472
    %516 = vmatpush1.msra.mxu0 %v471
    %517 = vmatprep.subr.mxu0 %v474
    %518 = vmatpush1.msra.mxu0 %v473
    %519 = vmatprep.subr.mxu0 %v476
    %520 = vmatpush1.msra.mxu0 %v475
    %521 = vmatprep.subr.mxu0 %v478
    %522 = vmatpush1.msra.mxu0 %v477
    %523 = vmatprep.subr.mxu0 %v480
    %524 = vmatpush1.msra.mxu0 %v479
    %525 = vmatprep.subr.mxu0 %v482
    %526 = vmatpush1.msra.mxu0 %v481
    %527 = vmatprep.subr.mxu0 %v484
    %528 = vmatpush1.msra.mxu0 %v483
    %529 = vmatprep.subr.mxu0 %v486
    %530 = vmatpush1.msra.mxu0 %v485
    %531 = vmatprep.subr.mxu0 %v488
    %532 = vmatpush1.msra.mxu0 %v487
    %533 = vmatprep.subr.mxu0 %v490
    %534 = vmatpush1.msra.mxu0 %v489
    %535 = vmatprep.subr.mxu0 %v492
    %536 = vmatpush1.msra.mxu0 %v491
    %537 = vmatprep.subr.mxu0 %v494
    %538 = vmatpush1.msra.mxu0 %v493
    %539 = vmatprep.subr.mxu0 %v496
    %540 = vmatpush1.msra.mxu0 %v495
    %541 = vmatprep.subr.mxu0 0.0
    %542 = vmatpush1.msra.mxu0 0.0
    %543 = vmatprep.subr.mxu0 0.0
    %544 = vmatpush1.msra.mxu0 0.0
    %545 = vmatprep.subr.mxu0 0.0
    %546 = vmatpush1.msra.mxu0 0.0
    %547 = vmatprep.subr.mxu0 0.0
    %548 = vmatpush1.msra.mxu0 0.0
    %549 = vmatprep.subr.mxu0 0.0
    %550 = vmatpush1.msra.mxu0 0.0
    %551 = vmatprep.subr.mxu0 0.0
    %552 = vmatpush1.msra.mxu0 0.0
    %553 = vmatprep.subr.mxu0 0.0
    %554 = vmatpush1.msra.mxu0 0.0
    %555 = vmatprep.subr.mxu0 0.0
    %556 = vmatpush1.msra.mxu0 0.0
    %557 = vmatprep.subr.mxu0 0.0
    %558 = vmatpush1.msra.mxu0 0.0
    %559 = vmatprep.subr.mxu0 0.0
    %560 = vmatpush1.msra.mxu0 0.0
    %561 = vmatprep.subr.mxu0 0.0
    %562 = vmatpush1.msra.mxu0 0.0
    %563 = vmatprep.subr.mxu0 0.0
    %564 = vmatpush1.msra.mxu0 0.0
    %565 = vmatprep.subr.mxu0 0.0
    %566 = vmatpush1.msra.mxu0 0.0
    %567 = vmatprep.subr.mxu0 0.0
    %568 = vmatpush1.msra.mxu0 0.0
    %569 = vmatprep.subr.mxu0 0.0
    %570 = vmatpush1.msra.mxu0 0.0
    %571 = vmatprep.subr.mxu0 0.0
    %572 = vmatpush1.msra.mxu0 0.0
    %573 = vmatprep.mubr.f32.mxu0 0.0
    %574 = vmatmul.mubr.f32.gmra.mrb[0].mxu0 %v464
    %v575 = vpop.f32.mrb[0].mxu0
    %v576 = vadd.f32 %v502, %v575
    %v577 = vpop.f32.mrb[0].mxu0
    %v578 = vadd.f32 %v506, %v577
    %579 = vdwg.mxu0
    %v580 = vmax.f32 %v576, 0.0
    %v581 = vmax.f32 %v578, 0.0
    %v582 = vld [vmem:[%s12] sm:$0xff]
    %v583 = vld [vmem:[%s12 + $0x8] sm:$0xff]
    %v584 = vld [vmem:[%s12 + $0x10] sm:$0xff]
    %v585 = vld [vmem:[%s12 + $0x18] sm:$0xff]
    %v586 = vld [vmem:[%s12 + $0x20] sm:$0xff]
    %v587 = vld [vmem:[%s12 + $0x28] sm:$0xff]
    %v588 = vld [vmem:[%s12 + $0x30] sm:$0xff]
    %v589 = vld [vmem:[%s12 + $0x38] sm:$0xff]
    %v590 = vld [vmem:[%s12 + $0x40] sm:$0xff]
    %v591 = vld [vmem:[%s12 + $0x48] sm:$0xff]
    %v592 = vld [vmem:[%s12 + $0x50] sm:$0xff]
    %v593 = vld [vmem:[%s12 + $0x58] sm:$0xff]
    %v594 = vld [vmem:[%s12 + $0x60] sm:$0xff]
    %v595 = vld [vmem:[%s12 + $0x68] sm:$0xff]
    %v596 = vld [vmem:[%s12 + $0x70] sm:$0xff]
    %v597 = vld [vmem:[%s12 + $0x78] sm:$0xff]
    %v598 = vld [vmem:[%s12 + $0x80] sm:$0xff]
    %v599 = vld [vmem:[%s12 + $0x88] sm:$0xff]
    %v600 = vld [vmem:[%s12 + $0x90] sm:$0xff]
    %v601 = vld [vmem:[%s12 + $0x98] sm:$0xff]
    %v602 = vld [vmem:[%s12 + $0xa0] sm:$0xff]
    %v603 = vld [vmem:[%s12 + $0xa8] sm:$0xff]
    %v604 = vld [vmem:[%s12 + $0xb0] sm:$0xff]
    %v605 = vld [vmem:[%s12 + $0xb8] sm:$0xff]
    %v606 = vld [vmem:[%s12 + $0xc0] sm:$0xff]
    %v607 = vld [vmem:[%s12 + $0xc8] sm:$0xff]
    %v608 = vld [vmem:[%s12 + $0xd0] sm:$0xff]
    %v609 = vld [vmem:[%s12 + $0xd8] sm:$0xff]
    %v610 = vld [vmem:[%s12 + $0xe0] sm:$0xff]
    %v611 = vld [vmem:[%s12 + $0xe8] sm:$0xff]
    %v612 = vld [vmem:[%s12 + $0xf0] sm:$0xff]
    %v613 = vld [vmem:[%s12 + $0xf8] sm:$0xff]
    %v614 = vld [vmem:[%s13] sm:$0x1]
    %v616 = vlaneseq
    %v617 = vshrl.u32 %v616, 7
    %v618 = vsub.s32 0, %v617
    %v619 = vrot.slane %v614, %v618
    %621 = vmatprep.subr.mxu0 0.0
    %622 = vmatpush1.msra.mxu0 %v582
    %623 = vmatprep.subr.mxu0 0.0
    %624 = vmatpush1.msra.mxu0 %v583
    %625 = vmatprep.subr.mxu0 0.0
    %626 = vmatpush1.msra.mxu0 %v584
    %627 = vmatprep.subr.mxu0 0.0
    %628 = vmatpush1.msra.mxu0 %v585
    %629 = vmatprep.subr.mxu0 0.0
    %630 = vmatpush1.msra.mxu0 %v586
    %631 = vmatprep.subr.mxu0 0.0
    %632 = vmatpush1.msra.mxu0 %v587
    %633 = vmatprep.subr.mxu0 0.0
    %634 = vmatpush1.msra.mxu0 %v588
    %635 = vmatprep.subr.mxu0 0.0
    %636 = vmatpush1.msra.mxu0 %v589
    %637 = vmatprep.subr.mxu0 0.0
    %638 = vmatpush1.msra.mxu0 %v590
    %639 = vmatprep.subr.mxu0 0.0
    %640 = vmatpush1.msra.mxu0 %v591
    %641 = vmatprep.subr.mxu0 0.0
    %642 = vmatpush1.msra.mxu0 %v592
    %643 = vmatprep.subr.mxu0 0.0
    %644 = vmatpush1.msra.mxu0 %v593
    %645 = vmatprep.subr.mxu0 0.0
    %646 = vmatpush1.msra.mxu0 %v594
    %647 = vmatprep.subr.mxu0 0.0
    %648 = vmatpush1.msra.mxu0 %v595
    %649 = vmatprep.subr.mxu0 0.0
    %650 = vmatpush1.msra.mxu0 %v596
    %651 = vmatprep.subr.mxu0 0.0
    %652 = vmatpush1.msra.mxu0 %v597
    %653 = vmatprep.subr.mxu0 0.0
    %654 = vmatpush1.msra.mxu0 %v598
    %655 = vmatprep.subr.mxu0 0.0
    %656 = vmatpush1.msra.mxu0 %v599
    %657 = vmatprep.subr.mxu0 0.0
    %658 = vmatpush1.msra.mxu0 %v600
    %659 = vmatprep.subr.mxu0 0.0
    %660 = vmatpush1.msra.mxu0 %v601
    %661 = vmatprep.subr.mxu0 0.0
    %662 = vmatpush1.msra.mxu0 %v602
    %663 = vmatprep.subr.mxu0 0.0
    %664 = vmatpush1.msra.mxu0 %v603
    %665 = vmatprep.subr.mxu0 0.0
    %666 = vmatpush1.msra.mxu0 %v604
    %667 = vmatprep.subr.mxu0 0.0
    %668 = vmatpush1.msra.mxu0 %v605
    %669 = vmatprep.subr.mxu0 0.0
    %670 = vmatpush1.msra.mxu0 %v606
    %671 = vmatprep.subr.mxu0 0.0
    %672 = vmatpush1.msra.mxu0 %v607
    %673 = vmatprep.subr.mxu0 0.0
    %674 = vmatpush1.msra.mxu0 %v608
    %675 = vmatprep.subr.mxu0 0.0
    %676 = vmatpush1.msra.mxu0 %v609
    %677 = vmatprep.subr.mxu0 0.0
    %678 = vmatpush1.msra.mxu0 %v610
    %679 = vmatprep.subr.mxu0 0.0
    %680 = vmatpush1.msra.mxu0 %v611
    %681 = vmatprep.subr.mxu0 0.0
    %682 = vmatpush1.msra.mxu0 %v612
    %683 = vmatprep.subr.mxu0 0.0
    %684 = vmatpush1.msra.mxu0 %v613
    %685 = vmatprep.mubr.f32.mxu0 %v581
    %686 = vmatmul.mubr.f32.gmra.mrb[0].mxu0 %v580
    %v687 = vpop.f32.mrb[0].mxu0
    %v688 = vadd.f32 %v619, %v687
    %v689 = vpop.f32.mrb[0].mxu0
    %690 = vdwg.mxu0
    %v691 = vmax.f32 %v688, 0.0
    %693 = vrot.lane.b32.xlu0 %v369, 64
    %v694 = vpop.permute.xlu0 %693
    %v696 = vsel %vm92, %v691, %v694
    %vm697 = vcmask 785408
    %698 = vst.msk [vmem:[#allocation5] sm:$0xff] %vm697, %v696
    // Predicated region
    $region62: #{tpu_custom_call.1} parent=1 // pred_check
      _
    $region63: #{tpu_custom_call.1} parent=1 // pred_check_branch
      %700 = sbr.rel (0) target = $region65
    $region64: #{tpu_custom_call.1} parent=1 // pred_region
      %s702 = ssub.s32 128, 128
      %703 = vsyncadd [#allocation4], %s702
      %s705 = sshll.u32 [#allocation5], 4
      %s706 = int_to_ptr.vmem [resolvable:$true] %s705
      %708 = dma.vmem_to_hbm [thread:$0]  %s706, 128, %s14, [#allocation4]
    $region65: #{tpu_custom_call.1} parent=1 // pred_fallthru
      _
    // Predicated region
    $region66: #{tpu_custom_call.1} parent=1 // pred_check
      _
    $region67: #{tpu_custom_call.1} parent=1 // pred_check_branch
      %710 = sbr.rel (0) target = $region69
    $region68: #{tpu_custom_call.1} parent=1 // pred_region
      %711 = dma.done [#allocation4], 128
    $region69: #{tpu_custom_call.1} parent=1 // pred_fallthru
      _
    %712 = vsyncpa [#allocation3], 1
    %713 = vsyncpa [#allocation4], 1

</llo_original>
